<compile_context>
chip_gen: v6e
topology: v6e:2x2x1
jax: 0.10.0
libtpu: 0.0.40
codegen_flags: <defaults>
</compile_context>

<pallas_src>
import functools

import jax
import jax.numpy as jnp
from jax.experimental import pallas as pl
from jax.experimental.pallas import tpu as pltpu


# Lane-dense padded channel widths (conv-out / feature / class dims are
# zero-padded to 128 so every matmul N dim and every output store is a full
# vreg lane width -- unmasked vst).
CP = FP = KP = 128


# ----------------------------------------------------------------------------
# Fused kernel: im2col-conv + ReLU + global-avg-pool + fc1 + ReLU + fc2.
# Single invocation (no grid); the batch is fused into the matmul M dim.
#   patch_ref : (B*HW, 9*Cin)  bf16   -- im2col patches for the whole batch
#   wc_ref    : (9*Cin, CP)    bf16   -- conv weight, Cout zero-padded to CP
#   bc_ref    : (1, CP)        f32
#   w1_ref    : (CP, FP)       bf16   -- fc1 weight, zero-padded
#   b1_ref    : (1, FP)        f32
#   w2_ref    : (FP, KP)       bf16   -- fc2 weight, zero-padded
#   b2_ref    : (1, KP)        f32
#   feat_ref  : (B, FP)        f32    -- features (lane-dense, padded)
#   logit_ref : (B, KP)        f32    -- logits   (lane-dense, padded)
# ----------------------------------------------------------------------------
def fused_network_kernel(patch_ref, wc_ref, bc_ref, w1_ref, b1_ref,
                         w2_ref, b2_ref, feat_ref, logit_ref, *, B, HW):
    patches = patch_ref[...]                                   # (B*HW, 9*Cin)

    # Conv as a single batched matmul (f32 accumulation), bias + ReLU in f32.
    conv = jnp.dot(patches, wc_ref[...],
                   preferred_element_type=jnp.float32)         # (B*HW, CP)
    conv = jnp.maximum(conv + bc_ref[...], 0.0)

    # Global average pool as an f32 reduction over the HW (sublane) axis.
    # (HW = 256 is 8-aligned, so the reshape is a clean sublane split; no
    # bf16 cast of the large conv activation, no M=1 MXU push.)
    pooled = conv.reshape(B, HW, CP).sum(axis=1) * (1.0 / HW)  # (B, CP) f32

    # fc1 + ReLU  -> features.
    feats = jnp.dot(pooled.astype(jnp.bfloat16), w1_ref[...],
                    preferred_element_type=jnp.float32)
    feats = jnp.maximum(feats + b1_ref[...], 0.0)              # (B, FP)
    feat_ref[...] = feats

    # fc2 -> logits (the network prediction).
    logits = jnp.dot(feats.astype(jnp.bfloat16), w2_ref[...],
                     preferred_element_type=jnp.float32)
    logit_ref[...] = logits + b2_ref[...]                      # (B, KP)


# ----------------------------------------------------------------------------
# Synthetic "network" (deterministic parameters) + DeepCluster wrapper.
# ----------------------------------------------------------------------------
def init_params(key, cin, cmid, feat_dim, n_classes):
    k1, k2, k3 = jax.random.split(key, 3)
    return {
        "conv_w": 0.1 * jax.random.normal(k1, (3, 3, cin, cmid), jnp.float32),
        "conv_b": jnp.zeros((cmid,), jnp.float32),
        "fc1_w": 0.1 * jax.random.normal(k2, (cmid, feat_dim), jnp.float32),
        "fc1_b": jnp.zeros((feat_dim,), jnp.float32),
        "fc2_w": 0.1 * jax.random.normal(k3, (feat_dim, n_classes), jnp.float32),
        "fc2_b": jnp.zeros((n_classes,), jnp.float32),
    }


def _pad2(a, rows, cols):
    r, c = a.shape
    return jnp.pad(a, ((0, rows - r), (0, cols - c)))


def prepare_params(params):
    """Zero-pad to lane-dense 128-wide and cast matmul operands to bf16.

    Runs ONCE at model construction -- the per-call forward only sees the
    already-padded tensors, so no pad/cast HLOs on the hot path.
    """
    cin, cmid = params["conv_w"].shape[2], params["conv_w"].shape[3]
    feat_dim = params["fc1_w"].shape[-1]
    n_classes = params["fc2_w"].shape[-1]
    k9 = 9 * cin
    return {
        "wc": _pad2(params["conv_w"].reshape(k9, cmid), k9, CP).astype(jnp.bfloat16),
        "bc": jnp.pad(params["conv_b"], (0, CP - cmid)).reshape(1, CP).astype(jnp.float32),
        "w1": _pad2(params["fc1_w"], CP, FP).astype(jnp.bfloat16),
        "b1": jnp.pad(params["fc1_b"], (0, FP - feat_dim)).reshape(1, FP).astype(jnp.float32),
        "w2": _pad2(params["fc2_w"], FP, KP).astype(jnp.bfloat16),
        "b2": jnp.pad(params["fc2_b"], (0, KP - n_classes)).reshape(1, KP).astype(jnp.float32),
    }


def network_forward(prepared, x_nchw, *, feat_dim, n_classes):
    """Pallas implementation of the wrapped feature-extractor network."""
    B, Cin, H, W = x_nchw.shape
    HW = H * W
    K9 = 9 * Cin

    # --- XLA-side glue: NCHW -> NHWC in bf16, zero-pad spatially, im2col. ---
    # im2col in bf16 halves the bytes moved by the 9 slices + concat; the
    # conv matmul operands are bf16 anyway so precision is unchanged.
    # K9 = 36 is intentionally NOT padded to 128 (contraction is zero-extended
    # in hardware; padding would only inflate patch HBM traffic ~3.5x).
    x = jnp.transpose(x_nchw, (0, 2, 3, 1)).astype(jnp.bfloat16)
    x_pad = jnp.pad(x, ((0, 0), (1, 1), (1, 1), (0, 0)))
    taps = [x_pad[:, dy:dy + H, dx:dx + W, :]
            for dy in range(3) for dx in range(3)]
    patches = jnp.concatenate(taps, axis=-1).reshape(B * HW, K9)

    # Single pallas_call invocation, no grid: whole (tiny) operands live in
    # VMEM, batch fused into M.  Total VMEM use < 1 MiB, well under default
    # scoped limits on all generations (re-derive tiling with an HW grid axis
    # + pooling accumulator before scaling H/W/Cmid up -- see perf notes).
    feats_p, logits_p = pl.pallas_call(
        functools.partial(fused_network_kernel, B=B, HW=HW),
        out_shape=(
            jax.ShapeDtypeStruct((B, FP), jnp.float32),
            jax.ShapeDtypeStruct((B, KP), jnp.float32),
        ),
    )(patches, prepared["wc"], prepared["bc"], prepared["w1"],
      prepared["b1"], prepared["w2"], prepared["b2"])

    feats = feats_p[:, :feat_dim]
    logits = logits_p[:, :n_classes]

    # DeepCluster requires the network to return (prediction, {'features': ...}).
    return logits, {"features": feats}


class DeepClusterPallas:
    """DeepCluster.forward(x) == self.network(x)."""

    # TODO(synk): update_pseudo_labels / compute_features / PCA+k-means
    # clustering are training-time host-side utilities (sklearn/faiss), not
    # part of the forward pass, so they are not implemented as kernels.
    def __init__(self, params):
        self.params = params
        feat_dim = int(params["fc1_w"].shape[-1])
        n_classes = int(params["fc2_w"].shape[-1])
        # Pad / cast parameters exactly once, outside the per-call path.
        self.prepared = prepare_params(params)
        self._fwd = jax.jit(functools.partial(
            network_forward, feat_dim=feat_dim, n_classes=n_classes))

    def forward(self, x):
        return self._fwd(self.prepared, x)

    __call__ = forward


if __name__ == "__main__":
    key = jax.random.PRNGKey(0)
    kx, kp = jax.random.split(key)

    B, C, H, W = 2, 4, 16, 16        # input: (batch, channels, *dims), NCHW
    CMID, FEAT, NCLS = 8, 32, 10

    x = jax.random.normal(kx, (B, C, H, W), dtype=jnp.float32)
    params = init_params(kp, C, CMID, FEAT, NCLS)

    model = DeepClusterPallas(params)
    logits, extra = model(x)

    jax.block_until_ready(logits)
    jax.block_until_ready(extra["features"])

    assert logits.shape == (B, NCLS)
    assert extra["features"].shape == (B, FEAT)
    assert bool(jnp.all(jnp.isfinite(logits)))
    assert bool(jnp.all(jnp.isfinite(extra["features"])))
    print("KERNEL_OK")
</pallas_src>

<mosaic_0001>
module attributes {stable_mosaic.version = 11 : i64} {
  func.func @fused_network_kernel(%arg0: memref<512x36xbf16, #tpu.memory_space<vmem>>, %arg1: memref<36x128xbf16, #tpu.memory_space<vmem>>, %arg2: memref<1x128xf32, #tpu.memory_space<vmem>>, %arg3: memref<128x128xbf16, #tpu.memory_space<vmem>>, %arg4: memref<1x128xf32, #tpu.memory_space<vmem>>, %arg5: memref<128x128xbf16, #tpu.memory_space<vmem>>, %arg6: memref<1x128xf32, #tpu.memory_space<vmem>>, %arg7: memref<2x128xf32, #tpu.memory_space<vmem>>, %arg8: memref<2x128xf32, #tpu.memory_space<vmem>>) attributes {dimension_semantics = [], scalar_prefetch = 0 : i64, scratch_operands = 0 : i64, tpu.core_type = #tpu.core_type<tc>} {
    %c0 = arith.constant 0 : index
    %c0_0 = arith.constant 0 : index
    %0 = vector.load %arg0[%c0, %c0_0] : memref<512x36xbf16, #tpu.memory_space<vmem>>, vector<512x36xbf16>
    %c0_1 = arith.constant 0 : index
    %c0_2 = arith.constant 0 : index
    %1 = vector.load %arg1[%c0_1, %c0_2] : memref<36x128xbf16, #tpu.memory_space<vmem>>, vector<36x128xbf16>
    %cst = arith.constant dense<0.000000e+00> : vector<512x128xf32>
    %2 = tpu.matmul %0, %1, %cst {dimension_numbers = #tpu.dot_dimension_numbers<[1], [0], [0], [1], [0, 0, 1, 1], [], []>} : vector<512x36xbf16>, vector<36x128xbf16>, vector<512x128xf32> -> vector<512x128xf32>
    %c0_3 = arith.constant 0 : index
    %c0_4 = arith.constant 0 : index
    %3 = vector.load %arg2[%c0_3, %c0_4] : memref<1x128xf32, #tpu.memory_space<vmem>>, vector<1x128xf32>
    %4 = vector.broadcast %3 : vector<1x128xf32> to vector<512x128xf32>
    %5 = arith.addf %2, %4 : vector<512x128xf32>
    %cst_5 = arith.constant 0.000000e+00 : f32
    %6 = vector.broadcast %cst_5 : f32 to vector<512x128xf32>
    %7 = arith.maximumf %5, %6 : vector<512x128xf32>
    %8 = vector.shape_cast %7 : vector<512x128xf32> to vector<2x256x128xf32>
    %cst_6 = arith.constant dense<0.000000e+00> : vector<2x128xf32>
    %9 = vector.multi_reduction <add>, %8, %cst_6 [1] : vector<2x256x128xf32> to vector<2x128xf32>
    %cst_7 = arith.constant 3.906250e-03 : f32
    %10 = vector.broadcast %cst_7 : f32 to vector<2x128xf32>
    %11 = arith.mulf %9, %10 : vector<2x128xf32>
    %12 = arith.truncf %11 : vector<2x128xf32> to vector<2x128xbf16>
    %c0_8 = arith.constant 0 : index
    %c0_9 = arith.constant 0 : index
    %13 = vector.load %arg3[%c0_8, %c0_9] : memref<128x128xbf16, #tpu.memory_space<vmem>>, vector<128x128xbf16>
    %cst_10 = arith.constant dense<0.000000e+00> : vector<2x128xf32>
    %14 = tpu.matmul %12, %13, %cst_10 {dimension_numbers = #tpu.dot_dimension_numbers<[1], [0], [0], [1], [0, 0, 1, 1], [], []>} : vector<2x128xbf16>, vector<128x128xbf16>, vector<2x128xf32> -> vector<2x128xf32>
    %c0_11 = arith.constant 0 : index
    %c0_12 = arith.constant 0 : index
    %15 = vector.load %arg4[%c0_11, %c0_12] : memref<1x128xf32, #tpu.memory_space<vmem>>, vector<1x128xf32>
    %16 = vector.broadcast %15 : vector<1x128xf32> to vector<2x128xf32>
    %17 = arith.addf %14, %16 : vector<2x128xf32>
    %cst_13 = arith.constant 0.000000e+00 : f32
    %18 = vector.broadcast %cst_13 : f32 to vector<2x128xf32>
    %19 = arith.maximumf %17, %18 : vector<2x128xf32>
    %c0_14 = arith.constant 0 : index
    %c0_15 = arith.constant 0 : index
    %20 = vector.load %arg7[%c0_14, %c0_15] : memref<2x128xf32, #tpu.memory_space<vmem>>, vector<2x128xf32>
    tpu.vector_store %arg7[%c0_14, %c0_15], %19 {strides = array<i32>} : memref<2x128xf32, #tpu.memory_space<vmem>>, vector<2x128xf32>,
    %21 = arith.truncf %19 : vector<2x128xf32> to vector<2x128xbf16>
    %c0_16 = arith.constant 0 : index
    %c0_17 = arith.constant 0 : index
    %22 = vector.load %arg5[%c0_16, %c0_17] : memref<128x128xbf16, #tpu.memory_space<vmem>>, vector<128x128xbf16>
    %cst_18 = arith.constant dense<0.000000e+00> : vector<2x128xf32>
    %23 = tpu.matmul %21, %22, %cst_18 {dimension_numbers = #tpu.dot_dimension_numbers<[1], [0], [0], [1], [0, 0, 1, 1], [], []>} : vector<2x128xbf16>, vector<128x128xbf16>, vector<2x128xf32> -> vector<2x128xf32>
    %c0_19 = arith.constant 0 : index
    %c0_20 = arith.constant 0 : index
    %24 = vector.load %arg6[%c0_19, %c0_20] : memref<1x128xf32, #tpu.memory_space<vmem>>, vector<1x128xf32>
    %25 = vector.broadcast %24 : vector<1x128xf32> to vector<2x128xf32>
    %26 = arith.addf %23, %25 : vector<2x128xf32>
    %c0_21 = arith.constant 0 : index
    %c0_22 = arith.constant 0 : index
    %27 = vector.load %arg8[%c0_21, %c0_22] : memref<2x128xf32, #tpu.memory_space<vmem>>, vector<2x128xf32>
    tpu.vector_store %arg8[%c0_21, %c0_22], %26 {strides = array<i32>} : memref<2x128xf32, #tpu.memory_space<vmem>>, vector<2x128xf32>,
    return
  }
}

</mosaic_0001>

<llo_original>
// kernel: network_forward.1
$region0: #{network_forward.1}
  #allocation0 [shape = 'u32[]', space=smem, size = 0x4, offset = 0x4, fixed_abs, tag = 'smem constant byte address 0x4 - core index']
  #allocation1 [shape = 'u32[144,128]{1,0:T(1,128)}', space=vmem, size = 0x12000, scoped, tag = 'internal scratch']
  %s0 = inlined_call_operand.vmem [shape: bf16[512,36], index: 0, kind: input, shape index: {}]
  %s1 = inlined_call_operand.vmem [shape: bf16[36,128], index: 1, kind: input, shape index: {}]
  %s2 = inlined_call_operand.vmem [shape: f32[1,128], index: 2, kind: input, shape index: {}]
  %s3 = inlined_call_operand.vmem [shape: bf16[128,128], index: 3, kind: input, shape index: {}]
  %s4 = inlined_call_operand.vmem [shape: f32[1,128], index: 4, kind: input, shape index: {}]
  %s5 = inlined_call_operand.vmem [shape: bf16[128,128], index: 5, kind: input, shape index: {}]
  %s6 = inlined_call_operand.vmem [shape: f32[1,128], index: 6, kind: input, shape index: {}]
  %s7 = inlined_call_operand.hbm [shape: f32[2,128], index: 7, kind: output, shape index: {0}]
  %s8 = inlined_call_operand.hbm [shape: f32[2,128], index: 8, kind: output, shape index: {1}]
  %9 = xla_tuple %s7, %s8
  %s10 = sld [smem:[#allocation0]]
  $region46: #{network_forward.1} parent=0
    _
  %s12 = ssub.s32 1, %s10
  %s13 = scalar_select 0, %s12, %s10
  $region1: #{network_forward.1} parent=0
    #allocation2 [shape = 'u8[1024]{0}', space=vmem, size = 0x400, scoped, tag = 'output window, operand 0, single buffered']
    #allocation3 [shape = 's32[1]{0}', space=sflag, size = 0x4, scoped, tag = 'scoped memory for network_forward.1']
    #allocation4 [shape = 'u8[1024]{0}', space=vmem, size = 0x400, scoped, tag = 'output window, operand 1, single buffered']
    #allocation5 [shape = 's32[1]{0}', space=sflag, size = 0x4, scoped, tag = 'scoped memory for network_forward.1']
    %14 = vsyncpa [#allocation3], 0
    %15 = vsyncpa [#allocation5], 0
    // Predicated region
    $region2: #{network_forward.1} parent=1 // pred_check
      _
    $region3: #{network_forward.1} parent=1 // pred_check_branch
      %17 = sbr.rel (0) target = $region5
    $region4: #{network_forward.1} parent=1 // pred_region
      _
    $region5: #{network_forward.1} parent=1 // pred_fallthru
      _
    // Predicated region
    $region6: #{network_forward.1} parent=1 // pred_check
      _
    $region7: #{network_forward.1} parent=1 // pred_check_branch
      %19 = sbr.rel (0) target = $region9
    $region8: #{network_forward.1} parent=1 // pred_region
      _
    $region9: #{network_forward.1} parent=1 // pred_fallthru
      _
    // Predicated region
    $region10: #{network_forward.1} parent=1 // pred_check
      _
    $region11: #{network_forward.1} parent=1 // pred_check_branch
      %21 = sbr.rel (0) target = $region13
    $region12: #{network_forward.1} parent=1 // pred_region
      _
    $region13: #{network_forward.1} parent=1 // pred_fallthru
      _
    // Predicated region
    $region14: #{network_forward.1} parent=1 // pred_check
      _
    $region15: #{network_forward.1} parent=1 // pred_check_branch
      %23 = sbr.rel (0) target = $region17
    $region16: #{network_forward.1} parent=1 // pred_region
      _
    $region17: #{network_forward.1} parent=1 // pred_fallthru
      _
    // Predicated region
    $region18: #{network_forward.1} parent=1 // pred_check
      _
    $region19: #{network_forward.1} parent=1 // pred_check_branch
      %25 = sbr.rel (0) target = $region21
    $region20: #{network_forward.1} parent=1 // pred_region
      _
    $region21: #{network_forward.1} parent=1 // pred_fallthru
      _
    // Predicated region
    $region22: #{network_forward.1} parent=1 // pred_check
      _
    $region23: #{network_forward.1} parent=1 // pred_check_branch
      %27 = sbr.rel (0) target = $region25
    $region24: #{network_forward.1} parent=1 // pred_region
      _
    $region25: #{network_forward.1} parent=1 // pred_fallthru
      _
    // Predicated region
    $region26: #{network_forward.1} parent=1 // pred_check
      _
    $region27: #{network_forward.1} parent=1 // pred_check_branch
      %29 = sbr.rel (0) target = $region29
    $region28: #{network_forward.1} parent=1 // pred_region
      _
    $region29: #{network_forward.1} parent=1 // pred_fallthru
      _
    %v31 = vld [vmem:[%s0] sm:$0xf]
    %v32 = vld [vmem:[%s0 + $0x4] sm:$0xf]
    %v33 = vld [vmem:[%s0 + $0x8] sm:$0xf]
    %v34 = vld [vmem:[%s0 + $0xc] sm:$0xf]
    %v35 = vld [vmem:[%s0 + $0x10] sm:$0xf]
    %v36 = vld [vmem:[%s0 + $0x14] sm:$0xf]
    %v37 = vld [vmem:[%s0 + $0x18] sm:$0xf]
    %v38 = vld [vmem:[%s0 + $0x1c] sm:$0xf]
    %v39 = vld [vmem:[%s0 + $0x20] sm:$0xf]
    %v40 = vld [vmem:[%s0 + $0x24] sm:$0xf]
    %v41 = vld [vmem:[%s0 + $0x28] sm:$0xf]
    %v42 = vld [vmem:[%s0 + $0x2c] sm:$0xf]
    %v43 = vld [vmem:[%s0 + $0x30] sm:$0xf]
    %v44 = vld [vmem:[%s0 + $0x34] sm:$0xf]
    %v45 = vld [vmem:[%s0 + $0x38] sm:$0xf]
    %v46 = vld [vmem:[%s0 + $0x3c] sm:$0xf]
    %v47 = vld [vmem:[%s0 + $0x40] sm:$0xf]
    %v48 = vld [vmem:[%s0 + $0x44] sm:$0xf]
    %v49 = vld [vmem:[%s0 + $0x48] sm:$0xf]
    %v50 = vld [vmem:[%s0 + $0x4c] sm:$0xf]
    %v51 = vld [vmem:[%s0 + $0x50] sm:$0xf]
    %v52 = vld [vmem:[%s0 + $0x54] sm:$0xf]
    %v53 = vld [vmem:[%s0 + $0x58] sm:$0xf]
    %v54 = vld [vmem:[%s0 + $0x5c] sm:$0xf]
    %v55 = vld [vmem:[%s0 + $0x60] sm:$0xf]
    %v56 = vld [vmem:[%s0 + $0x64] sm:$0xf]
    %v57 = vld [vmem:[%s0 + $0x68] sm:$0xf]
    %v58 = vld [vmem:[%s0 + $0x6c] sm:$0xf]
    %v59 = vld [vmem:[%s0 + $0x70] sm:$0xf]
    %v60 = vld [vmem:[%s0 + $0x74] sm:$0xf]
    %v61 = vld [vmem:[%s0 + $0x78] sm:$0xf]
    %v62 = vld [vmem:[%s0 + $0x7c] sm:$0xf]
    %v63 = vld [vmem:[%s0 + $0x80] sm:$0xf]
    %v64 = vld [vmem:[%s0 + $0x84] sm:$0xf]
    %v65 = vld [vmem:[%s0 + $0x88] sm:$0xf]
    %v66 = vld [vmem:[%s0 + $0x8c] sm:$0xf]
    %v67 = vld [vmem:[%s0 + $0x90] sm:$0xf]
    %v68 = vld [vmem:[%s0 + $0x94] sm:$0xf]
    %v69 = vld [vmem:[%s0 + $0x98] sm:$0xf]
    %v70 = vld [vmem:[%s0 + $0x9c] sm:$0xf]
    %v71 = vld [vmem:[%s0 + $0xa0] sm:$0xf]
    %v72 = vld [vmem:[%s0 + $0xa4] sm:$0xf]
    %v73 = vld [vmem:[%s0 + $0xa8] sm:$0xf]
    %v74 = vld [vmem:[%s0 + $0xac] sm:$0xf]
    %v75 = vld [vmem:[%s0 + $0xb0] sm:$0xf]
    %v76 = vld [vmem:[%s0 + $0xb4] sm:$0xf]
    %v77 = vld [vmem:[%s0 + $0xb8] sm:$0xf]
    %v78 = vld [vmem:[%s0 + $0xbc] sm:$0xf]
    %v79 = vld [vmem:[%s0 + $0xc0] sm:$0xf]
    %v80 = vld [vmem:[%s0 + $0xc4] sm:$0xf]
    %v81 = vld [vmem:[%s0 + $0xc8] sm:$0xf]
    %v82 = vld [vmem:[%s0 + $0xcc] sm:$0xf]
    %v83 = vld [vmem:[%s0 + $0xd0] sm:$0xf]
    %v84 = vld [vmem:[%s0 + $0xd4] sm:$0xf]
    %v85 = vld [vmem:[%s0 + $0xd8] sm:$0xf]
    %v86 = vld [vmem:[%s0 + $0xdc] sm:$0xf]
    %v87 = vld [vmem:[%s0 + $0xe0] sm:$0xf]
    %v88 = vld [vmem:[%s0 + $0xe4] sm:$0xf]
    %v89 = vld [vmem:[%s0 + $0xe8] sm:$0xf]
    %v90 = vld [vmem:[%s0 + $0xec] sm:$0xf]
    %v91 = vld [vmem:[%s0 + $0xf0] sm:$0xf]
    %v92 = vld [vmem:[%s0 + $0xf4] sm:$0xf]
    %v93 = vld [vmem:[%s0 + $0xf8] sm:$0xf]
    %v94 = vld [vmem:[%s0 + $0xfc] sm:$0xf]
    %v95 = vld [vmem:[%s1] sm:$0xf]
    %v96 = vld [vmem:[%s1 + $0x4] sm:$0xf]
    %v97 = vld [vmem:[%s1 + $0x8] sm:$0xf]
    %v98 = vld [vmem:[%s1 + $0xc] sm:$0xf]
    %v99 = vld [vmem:[%s1 + $0x10] sm:$0x3]
    %v100 = vld [vmem:[%s2] sm:$0x1]
    %v102 = vlaneseq
    %v103 = vshrl.u32 %v102, 7
    %v104 = vsub.s32 0, %v103
    %v105 = vrot.slane %v100, %v104
    %v171 = vunpack.c.l.b16 %v31
    %v172 = vunpack.c.l.b16 %v32
    %v173 = vunpack.c.l.b16 %v33
    %v174 = vunpack.c.l.b16 %v34
    %v175 = vunpack.c.l.b16 %v35
    %v176 = vunpack.c.l.b16 %v36
    %v177 = vunpack.c.l.b16 %v37
    %v178 = vunpack.c.l.b16 %v38
    %v179 = vunpack.c.l.b16 %v39
    %v180 = vunpack.c.l.b16 %v40
    %v181 = vunpack.c.l.b16 %v41
    %v182 = vunpack.c.l.b16 %v42
    %v183 = vunpack.c.l.b16 %v43
    %v184 = vunpack.c.l.b16 %v44
    %v185 = vunpack.c.l.b16 %v45
    %v186 = vunpack.c.l.b16 %v46
    %v187 = vunpack.c.l.b16 %v47
    %v188 = vunpack.c.l.b16 %v48
    %v189 = vunpack.c.l.b16 %v49
    %v190 = vunpack.c.l.b16 %v50
    %v191 = vunpack.c.l.b16 %v51
    %v192 = vunpack.c.l.b16 %v52
    %v193 = vunpack.c.l.b16 %v53
    %v194 = vunpack.c.l.b16 %v54
    %v195 = vunpack.c.l.b16 %v55
    %v196 = vunpack.c.l.b16 %v56
    %v197 = vunpack.c.l.b16 %v57
    %v198 = vunpack.c.l.b16 %v58
    %v199 = vunpack.c.l.b16 %v59
    %v200 = vunpack.c.l.b16 %v60
    %v201 = vunpack.c.l.b16 %v61
    %v202 = vunpack.c.l.b16 %v62
    %v203 = vunpack.c.l.b16 %v63
    %v204 = vunpack.c.l.b16 %v64
    %v205 = vunpack.c.l.b16 %v65
    %v206 = vunpack.c.l.b16 %v66
    %v207 = vunpack.c.l.b16 %v67
    %v208 = vunpack.c.l.b16 %v68
    %v209 = vunpack.c.l.b16 %v69
    %v210 = vunpack.c.l.b16 %v70
    %v211 = vunpack.c.l.b16 %v71
    %v212 = vunpack.c.l.b16 %v72
    %v213 = vunpack.c.l.b16 %v73
    %v214 = vunpack.c.l.b16 %v74
    %v215 = vunpack.c.l.b16 %v75
    %v216 = vunpack.c.l.b16 %v76
    %v217 = vunpack.c.l.b16 %v77
    %v218 = vunpack.c.l.b16 %v78
    %v219 = vunpack.c.l.b16 %v79
    %v220 = vunpack.c.l.b16 %v80
    %v221 = vunpack.c.l.b16 %v81
    %v222 = vunpack.c.l.b16 %v82
    %v223 = vunpack.c.l.b16 %v83
    %v224 = vunpack.c.l.b16 %v84
    %v225 = vunpack.c.l.b16 %v85
    %v226 = vunpack.c.l.b16 %v86
    %v227 = vunpack.c.l.b16 %v87
    %v228 = vunpack.c.l.b16 %v88
    %v229 = vunpack.c.l.b16 %v89
    %v230 = vunpack.c.l.b16 %v90
    %v231 = vunpack.c.l.b16 %v91
    %v232 = vunpack.c.l.b16 %v92
    %v233 = vunpack.c.l.b16 %v93
    %v234 = vunpack.c.l.b16 %v94
    %v235 = vpack.c.b16 %v172, %v171
    %v236 = vpack.c.b16 %v174, %v173
    %v237 = vpack.c.b16 %v176, %v175
    %v238 = vpack.c.b16 %v178, %v177
    %v239 = vpack.c.b16 %v180, %v179
    %v240 = vpack.c.b16 %v182, %v181
    %v241 = vpack.c.b16 %v184, %v183
    %v242 = vpack.c.b16 %v186, %v185
    %v243 = vpack.c.b16 %v188, %v187
    %v244 = vpack.c.b16 %v190, %v189
    %v245 = vpack.c.b16 %v192, %v191
    %v246 = vpack.c.b16 %v194, %v193
    %v247 = vpack.c.b16 %v196, %v195
    %v248 = vpack.c.b16 %v198, %v197
    %v249 = vpack.c.b16 %v200, %v199
    %v250 = vpack.c.b16 %v202, %v201
    %v251 = vpack.c.b16 %v204, %v203
    %v252 = vpack.c.b16 %v206, %v205
    %v253 = vpack.c.b16 %v208, %v207
    %v254 = vpack.c.b16 %v210, %v209
    %v255 = vpack.c.b16 %v212, %v211
    %v256 = vpack.c.b16 %v214, %v213
    %v257 = vpack.c.b16 %v216, %v215
    %v258 = vpack.c.b16 %v218, %v217
    %v259 = vpack.c.b16 %v220, %v219
    %v260 = vpack.c.b16 %v222, %v221
    %v261 = vpack.c.b16 %v224, %v223
    %v262 = vpack.c.b16 %v226, %v225
    %v263 = vpack.c.b16 %v228, %v227
    %v264 = vpack.c.b16 %v230, %v229
    %v265 = vpack.c.b16 %v232, %v231
    %v266 = vpack.c.b16 %v234, %v233
    %v272 = vunpack.c.l.b16 %v95
    %v273 = vunpack.c.l.b16 %v96
    %v274 = vunpack.c.l.b16 %v97
    %v275 = vunpack.c.l.b16 %v98
    %v276 = vunpack.c.l.b16 %v99
    %v277 = vpack.c.b16 %v273, %v272
    %v278 = vpack.c.b16 %v275, %v274
    %v279 = vpack.c.b16 %v276, %v276
    %vm282 = vcmask 293888
    %v284 = vsel %vm282, %v235, 0
    %v287 = vsel %vm282, %v236, 0
    %v290 = vsel %vm282, %v237, 0
    %v293 = vsel %vm282, %v238, 0
    %v296 = vsel %vm282, %v239, 0
    %v299 = vsel %vm282, %v240, 0
    %v302 = vsel %vm282, %v241, 0
    %v305 = vsel %vm282, %v242, 0
    %v308 = vsel %vm282, %v243, 0
    %v311 = vsel %vm282, %v244, 0
    %v314 = vsel %vm282, %v245, 0
    %v317 = vsel %vm282, %v246, 0
    %v320 = vsel %vm282, %v247, 0
    %v323 = vsel %vm282, %v248, 0
    %v326 = vsel %vm282, %v249, 0
    %v329 = vsel %vm282, %v250, 0
    %v332 = vsel %vm282, %v251, 0
    %v335 = vsel %vm282, %v252, 0
    %v338 = vsel %vm282, %v253, 0
    %v341 = vsel %vm282, %v254, 0
    %v344 = vsel %vm282, %v255, 0
    %v347 = vsel %vm282, %v256, 0
    %v350 = vsel %vm282, %v257, 0
    %v353 = vsel %vm282, %v258, 0
    %v356 = vsel %vm282, %v259, 0
    %v359 = vsel %vm282, %v260, 0
    %v362 = vsel %vm282, %v261, 0
    %v365 = vsel %vm282, %v262, 0
    %v368 = vsel %vm282, %v263, 0
    %v371 = vsel %vm282, %v264, 0
    %v374 = vsel %vm282, %v265, 0
    %v377 = vsel %vm282, %v266, 0
    %vm379 = vcmask 1041408
    %v381 = vsel %vm379, %v279, 0
    %383 = vmatprep.subr.bf16.mxu0 0
    %384 = vmatpush1.bf16.msra.mxu0 0
    %385 = vmatprep.subr.bf16.mxu0 0
    %386 = vmatpush1.bf16.msra.mxu0 0
    %387 = vmatprep.subr.bf16.mxu0 0
    %388 = vmatpush1.bf16.msra.mxu0 0
    %389 = vmatprep.subr.bf16.mxu0 0
    %390 = vmatpush1.bf16.msra.mxu0 0
    %391 = vmatprep.subr.bf16.mxu0 0
    %392 = vmatpush1.bf16.msra.mxu0 0
    %393 = vmatprep.subr.bf16.mxu0 0
    %394 = vmatpush1.bf16.msra.mxu0 %v381
    %395 = vmatprep.subr.bf16.mxu0 0
    %396 = vmatpush1.bf16.msra.mxu0 %v278
    %397 = vmatprep.subr.bf16.mxu0 0
    %398 = vmatpush1.bf16.msra.mxu0 %v277
    %399 = vmatprep.subr.bf16.mxu0 0
    %400 = vmatpush2.bf16.msra.mxu0 0
    %401 = vmatprep.subr.bf16.mxu0 0
    %402 = vmatpush2.bf16.msra.mxu0 0
    %403 = vmatprep.subr.bf16.mxu0 0
    %404 = vmatpush2.bf16.msra.mxu0 0
    %405 = vmatprep.subr.bf16.mxu0 0
    %406 = vmatpush2.bf16.msra.mxu0 0
    %407 = vmatprep.subr.bf16.mxu0 0
    %408 = vmatpush2.bf16.msra.mxu0 0
    %409 = vmatprep.subr.bf16.mxu0 0
    %410 = vmatpush2.bf16.msra.mxu0 0
    %411 = vmatprep.subr.bf16.mxu0 0
    %412 = vmatpush2.bf16.msra.mxu0 0
    %413 = vmatprep.subr.bf16.mxu0 0
    %414 = vmatpush2.bf16.msra.mxu0 0
    %415 = vmatprep.mubr.bf16.mxu0 0
    %416 = vmatmul.mubr.bf16.gmra.mxu0 %v284
    %v417 = vpop.f32.mrf.mxu0
    %v418 = vadd.f32 %v105, %v417
    %v419 = vpop.f32.mrf.mxu0
    %v420 = vpop.f32.mrf.mxu0
    %v421 = vadd.f32 %v105, %v420
    %v422 = vpop.f32.mrf.mxu0
    %423 = vmatprep.mubr.bf16.mxu0 0
    %424 = vmatmul.mubr.bf16.gmra.mxu0 %v287
    %v425 = vpop.f32.mrf.mxu0
    %v426 = vadd.f32 %v105, %v425
    %v427 = vpop.f32.mrf.mxu0
    %v428 = vpop.f32.mrf.mxu0
    %v429 = vadd.f32 %v105, %v428
    %v430 = vpop.f32.mrf.mxu0
    %431 = vmatprep.mubr.bf16.mxu0 0
    %432 = vmatmul.mubr.bf16.gmra.mxu0 %v290
    %v433 = vpop.f32.mrf.mxu0
    %v434 = vadd.f32 %v105, %v433
    %v435 = vpop.f32.mrf.mxu0
    %v436 = vpop.f32.mrf.mxu0
    %v437 = vadd.f32 %v105, %v436
    %v438 = vpop.f32.mrf.mxu0
    %439 = vmatprep.mubr.bf16.mxu0 0
    %440 = vmatmul.mubr.bf16.gmra.mxu0 %v293
    %v441 = vpop.f32.mrf.mxu0
    %v442 = vadd.f32 %v105, %v441
    %v443 = vpop.f32.mrf.mxu0
    %v444 = vpop.f32.mrf.mxu0
    %v445 = vadd.f32 %v105, %v444
    %v446 = vpop.f32.mrf.mxu0
    %447 = vmatprep.mubr.bf16.mxu0 0
    %448 = vmatmul.mubr.bf16.gmra.mxu0 %v296
    %v449 = vpop.f32.mrf.mxu0
    %v450 = vadd.f32 %v105, %v449
    %v451 = vpop.f32.mrf.mxu0
    %v452 = vpop.f32.mrf.mxu0
    %v453 = vadd.f32 %v105, %v452
    %v454 = vpop.f32.mrf.mxu0
    %455 = vmatprep.mubr.bf16.mxu0 0
    %456 = vmatmul.mubr.bf16.gmra.mxu0 %v299
    %v457 = vpop.f32.mrf.mxu0
    %v458 = vadd.f32 %v105, %v457
    %v459 = vpop.f32.mrf.mxu0
    %v460 = vpop.f32.mrf.mxu0
    %v461 = vadd.f32 %v105, %v460
    %v462 = vpop.f32.mrf.mxu0
    %463 = vmatprep.mubr.bf16.mxu0 0
    %464 = vmatmul.mubr.bf16.gmra.mxu0 %v302
    %v465 = vpop.f32.mrf.mxu0
    %v466 = vadd.f32 %v105, %v465
    %v467 = vpop.f32.mrf.mxu0
    %v468 = vpop.f32.mrf.mxu0
    %v469 = vadd.f32 %v105, %v468
    %v470 = vpop.f32.mrf.mxu0
    %471 = vmatprep.mubr.bf16.mxu0 0
    %472 = vmatmul.mubr.bf16.gmra.mxu0 %v305
    %v473 = vpop.f32.mrf.mxu0
    %v474 = vadd.f32 %v105, %v473
    %v475 = vpop.f32.mrf.mxu0
    %v476 = vpop.f32.mrf.mxu0
    %v477 = vadd.f32 %v105, %v476
    %v478 = vpop.f32.mrf.mxu0
    %479 = vmatprep.mubr.bf16.mxu0 0
    %480 = vmatmul.mubr.bf16.gmra.mxu0 %v308
    %v481 = vpop.f32.mrf.mxu0
    %v482 = vadd.f32 %v105, %v481
    %v483 = vpop.f32.mrf.mxu0
    %v484 = vpop.f32.mrf.mxu0
    %v485 = vadd.f32 %v105, %v484
    %v486 = vpop.f32.mrf.mxu0
    %487 = vmatprep.mubr.bf16.mxu0 0
    %488 = vmatmul.mubr.bf16.gmra.mxu0 %v311
    %v489 = vpop.f32.mrf.mxu0
    %v490 = vadd.f32 %v105, %v489
    %v491 = vpop.f32.mrf.mxu0
    %v492 = vpop.f32.mrf.mxu0
    %v493 = vadd.f32 %v105, %v492
    %v494 = vpop.f32.mrf.mxu0
    %495 = vmatprep.mubr.bf16.mxu0 0
    %496 = vmatmul.mubr.bf16.gmra.mxu0 %v314
    %v497 = vpop.f32.mrf.mxu0
    %v498 = vadd.f32 %v105, %v497
    %v499 = vpop.f32.mrf.mxu0
    %v500 = vpop.f32.mrf.mxu0
    %v501 = vadd.f32 %v105, %v500
    %v502 = vpop.f32.mrf.mxu0
    %503 = vmatprep.mubr.bf16.mxu0 0
    %504 = vmatmul.mubr.bf16.gmra.mxu0 %v317
    %v505 = vpop.f32.mrf.mxu0
    %v506 = vadd.f32 %v105, %v505
    %v507 = vpop.f32.mrf.mxu0
    %v508 = vpop.f32.mrf.mxu0
    %v509 = vadd.f32 %v105, %v508
    %v510 = vpop.f32.mrf.mxu0
    %511 = vmatprep.mubr.bf16.mxu0 0
    %512 = vmatmul.mubr.bf16.gmra.mxu0 %v320
    %v513 = vpop.f32.mrf.mxu0
    %v514 = vadd.f32 %v105, %v513
    %v515 = vpop.f32.mrf.mxu0
    %v516 = vpop.f32.mrf.mxu0
    %v517 = vadd.f32 %v105, %v516
    %v518 = vpop.f32.mrf.mxu0
    %519 = vmatprep.mubr.bf16.mxu0 0
    %520 = vmatmul.mubr.bf16.gmra.mxu0 %v323
    %v521 = vpop.f32.mrf.mxu0
    %v522 = vadd.f32 %v105, %v521
    %v523 = vpop.f32.mrf.mxu0
    %v524 = vpop.f32.mrf.mxu0
    %v525 = vadd.f32 %v105, %v524
    %v526 = vpop.f32.mrf.mxu0
    %527 = vmatprep.mubr.bf16.mxu0 0
    %528 = vmatmul.mubr.bf16.gmra.mxu0 %v326
    %v529 = vpop.f32.mrf.mxu0
    %v530 = vadd.f32 %v105, %v529
    %v531 = vpop.f32.mrf.mxu0
    %v532 = vpop.f32.mrf.mxu0
    %v533 = vadd.f32 %v105, %v532
    %v534 = vpop.f32.mrf.mxu0
    %535 = vmatprep.mubr.bf16.mxu0 0
    %536 = vmatmul.mubr.bf16.gmra.mxu0 %v329
    %v537 = vpop.f32.mrf.mxu0
    %v538 = vadd.f32 %v105, %v537
    %v539 = vpop.f32.mrf.mxu0
    %v540 = vpop.f32.mrf.mxu0
    %v541 = vadd.f32 %v105, %v540
    %v542 = vpop.f32.mrf.mxu0
    %543 = vmatprep.mubr.bf16.mxu0 0
    %544 = vmatmul.mubr.bf16.gmra.mxu0 %v332
    %v545 = vpop.f32.mrf.mxu0
    %v546 = vadd.f32 %v105, %v545
    %v547 = vpop.f32.mrf.mxu0
    %v548 = vpop.f32.mrf.mxu0
    %v549 = vadd.f32 %v105, %v548
    %v550 = vpop.f32.mrf.mxu0
    %551 = vmatprep.mubr.bf16.mxu0 0
    %552 = vmatmul.mubr.bf16.gmra.mxu0 %v335
    %v553 = vpop.f32.mrf.mxu0
    %v554 = vadd.f32 %v105, %v553
    %v555 = vpop.f32.mrf.mxu0
    %v556 = vpop.f32.mrf.mxu0
    %v557 = vadd.f32 %v105, %v556
    %v558 = vpop.f32.mrf.mxu0
    %559 = vmatprep.mubr.bf16.mxu0 0
    %560 = vmatmul.mubr.bf16.gmra.mxu0 %v338
    %v561 = vpop.f32.mrf.mxu0
    %v562 = vadd.f32 %v105, %v561
    %v563 = vpop.f32.mrf.mxu0
    %v564 = vpop.f32.mrf.mxu0
    %v565 = vadd.f32 %v105, %v564
    %v566 = vpop.f32.mrf.mxu0
    %567 = vmatprep.mubr.bf16.mxu0 0
    %568 = vmatmul.mubr.bf16.gmra.mxu0 %v341
    %v569 = vpop.f32.mrf.mxu0
    %v570 = vadd.f32 %v105, %v569
    %v571 = vpop.f32.mrf.mxu0
    %v572 = vpop.f32.mrf.mxu0
    %v573 = vadd.f32 %v105, %v572
    %v574 = vpop.f32.mrf.mxu0
    %575 = vmatprep.mubr.bf16.mxu0 0
    %576 = vmatmul.mubr.bf16.gmra.mxu0 %v344
    %v577 = vpop.f32.mrf.mxu0
    %v578 = vadd.f32 %v105, %v577
    %v579 = vpop.f32.mrf.mxu0
    %v580 = vpop.f32.mrf.mxu0
    %v581 = vadd.f32 %v105, %v580
    %v582 = vpop.f32.mrf.mxu0
    %583 = vmatprep.mubr.bf16.mxu0 0
    %584 = vmatmul.mubr.bf16.gmra.mxu0 %v347
    %v585 = vpop.f32.mrf.mxu0
    %v586 = vadd.f32 %v105, %v585
    %v587 = vpop.f32.mrf.mxu0
    %v588 = vpop.f32.mrf.mxu0
    %v589 = vadd.f32 %v105, %v588
    %v590 = vpop.f32.mrf.mxu0
    %591 = vmatprep.mubr.bf16.mxu0 0
    %592 = vmatmul.mubr.bf16.gmra.mxu0 %v350
    %v593 = vpop.f32.mrf.mxu0
    %v594 = vadd.f32 %v105, %v593
    %v595 = vpop.f32.mrf.mxu0
    %v596 = vpop.f32.mrf.mxu0
    %v597 = vadd.f32 %v105, %v596
    %v598 = vpop.f32.mrf.mxu0
    %599 = vmatprep.mubr.bf16.mxu0 0
    %600 = vmatmul.mubr.bf16.gmra.mxu0 %v353
    %v601 = vpop.f32.mrf.mxu0
    %v602 = vadd.f32 %v105, %v601
    %v603 = vpop.f32.mrf.mxu0
    %v604 = vpop.f32.mrf.mxu0
    %v605 = vadd.f32 %v105, %v604
    %v606 = vpop.f32.mrf.mxu0
    %607 = vmatprep.mubr.bf16.mxu0 0
    %608 = vmatmul.mubr.bf16.gmra.mxu0 %v356
    %v609 = vpop.f32.mrf.mxu0
    %v610 = vadd.f32 %v105, %v609
    %v611 = vpop.f32.mrf.mxu0
    %v612 = vpop.f32.mrf.mxu0
    %v613 = vadd.f32 %v105, %v612
    %v614 = vpop.f32.mrf.mxu0
    %615 = vmatprep.mubr.bf16.mxu0 0
    %616 = vmatmul.mubr.bf16.gmra.mxu0 %v359
    %v617 = vpop.f32.mrf.mxu0
    %v618 = vadd.f32 %v105, %v617
    %v619 = vpop.f32.mrf.mxu0
    %v620 = vpop.f32.mrf.mxu0
    %v621 = vadd.f32 %v105, %v620
    %v622 = vpop.f32.mrf.mxu0
    %623 = vmatprep.mubr.bf16.mxu0 0
    %624 = vmatmul.mubr.bf16.gmra.mxu0 %v362
    %v625 = vpop.f32.mrf.mxu0
    %v626 = vadd.f32 %v105, %v625
    %v627 = vpop.f32.mrf.mxu0
    %v628 = vpop.f32.mrf.mxu0
    %v629 = vadd.f32 %v105, %v628
    %v630 = vpop.f32.mrf.mxu0
    %631 = vmatprep.mubr.bf16.mxu0 0
    %632 = vmatmul.mubr.bf16.gmra.mxu0 %v365
    %v633 = vpop.f32.mrf.mxu0
    %v634 = vadd.f32 %v105, %v633
    %v635 = vpop.f32.mrf.mxu0
    %v636 = vpop.f32.mrf.mxu0
    %v637 = vadd.f32 %v105, %v636
    %v638 = vpop.f32.mrf.mxu0
    %639 = vmatprep.mubr.bf16.mxu0 0
    %640 = vmatmul.mubr.bf16.gmra.mxu0 %v368
    %v641 = vpop.f32.mrf.mxu0
    %v642 = vadd.f32 %v105, %v641
    %v643 = vpop.f32.mrf.mxu0
    %v644 = vpop.f32.mrf.mxu0
    %v645 = vadd.f32 %v105, %v644
    %v646 = vpop.f32.mrf.mxu0
    %647 = vmatprep.mubr.bf16.mxu0 0
    %648 = vmatmul.mubr.bf16.gmra.mxu0 %v371
    %v649 = vpop.f32.mrf.mxu0
    %v650 = vadd.f32 %v105, %v649
    %v651 = vpop.f32.mrf.mxu0
    %v652 = vpop.f32.mrf.mxu0
    %v653 = vadd.f32 %v105, %v652
    %v654 = vpop.f32.mrf.mxu0
    %655 = vmatprep.mubr.bf16.mxu0 0
    %656 = vmatmul.mubr.bf16.gmra.mxu0 %v374
    %v657 = vpop.f32.mrf.mxu0
    %v658 = vadd.f32 %v105, %v657
    %v659 = vpop.f32.mrf.mxu0
    %v660 = vpop.f32.mrf.mxu0
    %v661 = vadd.f32 %v105, %v660
    %v662 = vpop.f32.mrf.mxu0
    %663 = vmatprep.mubr.bf16.mxu0 0
    %664 = vmatmul.mubr.bf16.gmra.mxu0 %v377
    %v665 = vpop.f32.mrf.mxu0
    %v666 = vadd.f32 %v105, %v665
    %v667 = vpop.f32.mrf.mxu0
    %v668 = vpop.f32.mrf.mxu0
    %v669 = vadd.f32 %v105, %v668
    %v670 = vpop.f32.mrf.mxu0
    %671 = vdwg.mxu0
    %v672 = vmax.f32 %v418, 0.0
    %v673 = vmax.f32 %v421, 0.0
    %v674 = vmax.f32 %v426, 0.0
    %v675 = vmax.f32 %v429, 0.0
    %v676 = vmax.f32 %v434, 0.0
    %v677 = vmax.f32 %v437, 0.0
    %v678 = vmax.f32 %v442, 0.0
    %v679 = vmax.f32 %v445, 0.0
    %v680 = vmax.f32 %v450, 0.0
    %v681 = vmax.f32 %v453, 0.0
    %v682 = vmax.f32 %v458, 0.0
    %v683 = vmax.f32 %v461, 0.0
    %v684 = vmax.f32 %v466, 0.0
    %v685 = vmax.f32 %v469, 0.0
    %v686 = vmax.f32 %v474, 0.0
    %v687 = vmax.f32 %v477, 0.0
    %v688 = vmax.f32 %v482, 0.0
    %v689 = vmax.f32 %v485, 0.0
    %v690 = vmax.f32 %v490, 0.0
    %v691 = vmax.f32 %v493, 0.0
    %v692 = vmax.f32 %v498, 0.0
    %v693 = vmax.f32 %v501, 0.0
    %v694 = vmax.f32 %v506, 0.0
    %v695 = vmax.f32 %v509, 0.0
    %v696 = vmax.f32 %v514, 0.0
    %v697 = vmax.f32 %v517, 0.0
    %v698 = vmax.f32 %v522, 0.0
    %v699 = vmax.f32 %v525, 0.0
    %v700 = vmax.f32 %v530, 0.0
    %v701 = vmax.f32 %v533, 0.0
    %v702 = vmax.f32 %v538, 0.0
    %v703 = vmax.f32 %v541, 0.0
    %v704 = vmax.f32 %v546, 0.0
    %v705 = vmax.f32 %v549, 0.0
    %v706 = vmax.f32 %v554, 0.0
    %v707 = vmax.f32 %v557, 0.0
    %v708 = vmax.f32 %v562, 0.0
    %v709 = vmax.f32 %v565, 0.0
    %v710 = vmax.f32 %v570, 0.0
    %v711 = vmax.f32 %v573, 0.0
    %v712 = vmax.f32 %v578, 0.0
    %v713 = vmax.f32 %v581, 0.0
    %v714 = vmax.f32 %v586, 0.0
    %v715 = vmax.f32 %v589, 0.0
    %v716 = vmax.f32 %v594, 0.0
    %v717 = vmax.f32 %v597, 0.0
    %v718 = vmax.f32 %v602, 0.0
    %v719 = vmax.f32 %v605, 0.0
    %v720 = vmax.f32 %v610, 0.0
    %v721 = vmax.f32 %v613, 0.0
    %v722 = vmax.f32 %v618, 0.0
    %v723 = vmax.f32 %v621, 0.0
    %v724 = vmax.f32 %v626, 0.0
    %v725 = vmax.f32 %v629, 0.0
    %v726 = vmax.f32 %v634, 0.0
    %v727 = vmax.f32 %v637, 0.0
    %v728 = vmax.f32 %v642, 0.0
    %v729 = vmax.f32 %v645, 0.0
    %v730 = vmax.f32 %v650, 0.0
    %v731 = vmax.f32 %v653, 0.0
    %v732 = vmax.f32 %v658, 0.0
    %v733 = vmax.f32 %v661, 0.0
    %v734 = vmax.f32 %v666, 0.0
    %v735 = vmax.f32 %v669, 0.0
    %v736 = vadd.f32 %v672, %v673
    %v737 = vadd.f32 %v736, %v674
    %v738 = vadd.f32 %v737, %v675
    %v739 = vadd.f32 %v738, %v676
    %v740 = vadd.f32 %v739, %v677
    %v741 = vadd.f32 %v740, %v678
    %v742 = vadd.f32 %v741, %v679
    %v743 = vadd.f32 %v742, %v680
    %v744 = vadd.f32 %v743, %v681
    %v745 = vadd.f32 %v744, %v682
    %v746 = vadd.f32 %v745, %v683
    %v747 = vadd.f32 %v746, %v684
    %v748 = vadd.f32 %v747, %v685
    %v749 = vadd.f32 %v748, %v686
    %v750 = vadd.f32 %v749, %v687
    %v751 = vadd.f32 %v750, %v688
    %v752 = vadd.f32 %v751, %v689
    %v753 = vadd.f32 %v752, %v690
    %v754 = vadd.f32 %v753, %v691
    %v755 = vadd.f32 %v754, %v692
    %v756 = vadd.f32 %v755, %v693
    %v757 = vadd.f32 %v756, %v694
    %v758 = vadd.f32 %v757, %v695
    %v759 = vadd.f32 %v758, %v696
    %v760 = vadd.f32 %v759, %v697
    %v761 = vadd.f32 %v760, %v698
    %v762 = vadd.f32 %v761, %v699
    %v763 = vadd.f32 %v762, %v700
    %v764 = vadd.f32 %v763, %v701
    %v765 = vadd.f32 %v764, %v702
    %v766 = vadd.f32 %v765, %v703
    %v767 = vrot.slane %v766, 4
    %v768 = vadd.f32 %v766, %v767
    %v769 = vrot.slane %v768, 2
    %v770 = vadd.f32 %v768, %v769
    %v771 = vrot.slane %v770, 1
    %v772 = vadd.f32 %v770, %v771
    %v773 = vadd.f32 %v704, %v705
    %v774 = vadd.f32 %v773, %v706
    %v775 = vadd.f32 %v774, %v707
    %v776 = vadd.f32 %v775, %v708
    %v777 = vadd.f32 %v776, %v709
    %v778 = vadd.f32 %v777, %v710
    %v779 = vadd.f32 %v778, %v711
    %v780 = vadd.f32 %v779, %v712
    %v781 = vadd.f32 %v780, %v713
    %v782 = vadd.f32 %v781, %v714
    %v783 = vadd.f32 %v782, %v715
    %v784 = vadd.f32 %v783, %v716
    %v785 = vadd.f32 %v784, %v717
    %v786 = vadd.f32 %v785, %v718
    %v787 = vadd.f32 %v786, %v719
    %v788 = vadd.f32 %v787, %v720
    %v789 = vadd.f32 %v788, %v721
    %v790 = vadd.f32 %v789, %v722
    %v791 = vadd.f32 %v790, %v723
    %v792 = vadd.f32 %v791, %v724
    %v793 = vadd.f32 %v792, %v725
    %v794 = vadd.f32 %v793, %v726
    %v795 = vadd.f32 %v794, %v727
    %v796 = vadd.f32 %v795, %v728
    %v797 = vadd.f32 %v796, %v729
    %v798 = vadd.f32 %v797, %v730
    %v799 = vadd.f32 %v798, %v731
    %v800 = vadd.f32 %v799, %v732
    %v801 = vadd.f32 %v800, %v733
    %v802 = vadd.f32 %v801, %v734
    %v803 = vadd.f32 %v802, %v735
    %v804 = vrot.slane %v803, 4
    %v805 = vadd.f32 %v803, %v804
    %v806 = vrot.slane %v805, 2
    %v807 = vadd.f32 %v805, %v806
    %v808 = vrot.slane %v807, 1
    %v809 = vadd.f32 %v807, %v808
    %v810 = vmul.f32 %v772, 0.00390625
    %v811 = vmul.f32 %v809, 0.00390625
    %v812 = vpack.c.bf16 %v810, %v810
    %v813 = vpack.c.bf16 %v811, %v811
    %v814 = vld [vmem:[%s3] sm:$0xf]
    %v815 = vld [vmem:[%s3 + $0x4] sm:$0xf]
    %v816 = vld [vmem:[%s3 + $0x8] sm:$0xf]
    %v817 = vld [vmem:[%s3 + $0xc] sm:$0xf]
    %v818 = vld [vmem:[%s3 + $0x10] sm:$0xf]
    %v819 = vld [vmem:[%s3 + $0x14] sm:$0xf]
    %v820 = vld [vmem:[%s3 + $0x18] sm:$0xf]
    %v821 = vld [vmem:[%s3 + $0x1c] sm:$0xf]
    %v822 = vld [vmem:[%s3 + $0x20] sm:$0xf]
    %v823 = vld [vmem:[%s3 + $0x24] sm:$0xf]
    %v824 = vld [vmem:[%s3 + $0x28] sm:$0xf]
    %v825 = vld [vmem:[%s3 + $0x2c] sm:$0xf]
    %v826 = vld [vmem:[%s3 + $0x30] sm:$0xf]
    %v827 = vld [vmem:[%s3 + $0x34] sm:$0xf]
    %v828 = vld [vmem:[%s3 + $0x38] sm:$0xf]
    %v829 = vld [vmem:[%s3 + $0x3c] sm:$0xf]
    %v830 = vld [vmem:[%s4] sm:$0x1]
    %v832 = vlaneseq
    %v833 = vshrl.u32 %v832, 7
    %v834 = vsub.s32 0, %v833
    %v835 = vrot.slane %v830, %v834
    %v839 = vunpack.c.l.b16 %v812
    %v840 = vunpack.c.l.b16 %v813
    %vm841 = vcmask 1041409
    %v842 = vsel %vm841, %v840, %v839
    %v843 = vpack.c.b16 %v842, %v842
    %v861 = vunpack.c.l.b16 %v814
    %v862 = vunpack.c.l.b16 %v815
    %v863 = vunpack.c.l.b16 %v816
    %v864 = vunpack.c.l.b16 %v817
    %v865 = vunpack.c.l.b16 %v818
    %v866 = vunpack.c.l.b16 %v819
    %v867 = vunpack.c.l.b16 %v820
    %v868 = vunpack.c.l.b16 %v821
    %v869 = vunpack.c.l.b16 %v822
    %v870 = vunpack.c.l.b16 %v823
    %v871 = vunpack.c.l.b16 %v824
    %v872 = vunpack.c.l.b16 %v825
    %v873 = vunpack.c.l.b16 %v826
    %v874 = vunpack.c.l.b16 %v827
    %v875 = vunpack.c.l.b16 %v828
    %v876 = vunpack.c.l.b16 %v829
    %v877 = vpack.c.b16 %v862, %v861
    %v878 = vpack.c.b16 %v864, %v863
    %v879 = vpack.c.b16 %v866, %v865
    %v880 = vpack.c.b16 %v868, %v867
    %v881 = vpack.c.b16 %v870, %v869
    %v882 = vpack.c.b16 %v872, %v871
    %v883 = vpack.c.b16 %v874, %v873
    %v884 = vpack.c.b16 %v876, %v875
    %893 = vmatprep.subr.bf16.mxu0 0
    %894 = vmatpush1.bf16.msra.mxu0 %v884
    %895 = vmatprep.subr.bf16.mxu0 0
    %896 = vmatpush1.bf16.msra.mxu0 %v883
    %897 = vmatprep.subr.bf16.mxu0 0
    %898 = vmatpush1.bf16.msra.mxu0 %v882
    %899 = vmatprep.subr.bf16.mxu0 0
    %900 = vmatpush1.bf16.msra.mxu0 %v881
    %901 = vmatprep.subr.bf16.mxu0 0
    %902 = vmatpush1.bf16.msra.mxu0 %v880
    %903 = vmatprep.subr.bf16.mxu0 0
    %904 = vmatpush1.bf16.msra.mxu0 %v879
    %905 = vmatprep.subr.bf16.mxu0 0
    %906 = vmatpush1.bf16.msra.mxu0 %v878
    %907 = vmatprep.subr.bf16.mxu0 0
    %908 = vmatpush1.bf16.msra.mxu0 %v877
    %909 = vmatprep.subr.bf16.mxu0 0
    %910 = vmatpush2.bf16.msra.mxu0 0
    %911 = vmatprep.subr.bf16.mxu0 0
    %912 = vmatpush2.bf16.msra.mxu0 0
    %913 = vmatprep.subr.bf16.mxu0 0
    %914 = vmatpush2.bf16.msra.mxu0 0
    %915 = vmatprep.subr.bf16.mxu0 0
    %916 = vmatpush2.bf16.msra.mxu0 0
    %917 = vmatprep.subr.bf16.mxu0 0
    %918 = vmatpush2.bf16.msra.mxu0 0
    %919 = vmatprep.subr.bf16.mxu0 0
    %920 = vmatpush2.bf16.msra.mxu0 0
    %921 = vmatprep.subr.bf16.mxu0 0
    %922 = vmatpush2.bf16.msra.mxu0 0
    %923 = vmatprep.subr.bf16.mxu0 0
    %924 = vmatpush2.bf16.msra.mxu0 0
    %925 = vmatprep.mubr.bf16.mxu0 0
    %926 = vmatmul.mubr.bf16.gmra.mxu0 %v843
    %v927 = vpop.f32.mrf.mxu0
    %v928 = vadd.f32 %v835, %v927
    %v929 = vpop.f32.mrf.mxu0
    %v930 = vpop.f32.mrf.mxu0
    %v931 = vpop.f32.mrf.mxu0
    %932 = vdwg.mxu0
    %v933 = vmax.f32 %v928, 0.0
    %934 = vst [vmem:[#allocation2] sm:$0x3] %v933
    %v935 = vpack.c.bf16 %v933, %v933
    %v936 = vld [vmem:[%s5] sm:$0xf]
    %v937 = vld [vmem:[%s5 + $0x4] sm:$0xf]
    %v938 = vld [vmem:[%s5 + $0x8] sm:$0xf]
    %v939 = vld [vmem:[%s5 + $0xc] sm:$0xf]
    %v940 = vld [vmem:[%s5 + $0x10] sm:$0xf]
    %v941 = vld [vmem:[%s5 + $0x14] sm:$0xf]
    %v942 = vld [vmem:[%s5 + $0x18] sm:$0xf]
    %v943 = vld [vmem:[%s5 + $0x1c] sm:$0xf]
    %v944 = vld [vmem:[%s5 + $0x20] sm:$0xf]
    %v945 = vld [vmem:[%s5 + $0x24] sm:$0xf]
    %v946 = vld [vmem:[%s5 + $0x28] sm:$0xf]
    %v947 = vld [vmem:[%s5 + $0x2c] sm:$0xf]
    %v948 = vld [vmem:[%s5 + $0x30] sm:$0xf]
    %v949 = vld [vmem:[%s5 + $0x34] sm:$0xf]
    %v950 = vld [vmem:[%s5 + $0x38] sm:$0xf]
    %v951 = vld [vmem:[%s5 + $0x3c] sm:$0xf]
    %v952 = vld [vmem:[%s6] sm:$0x1]
    %v954 = vlaneseq
    %v955 = vshrl.u32 %v954, 7
    %v956 = vsub.s32 0, %v955
    %v957 = vrot.slane %v952, %v956
    %v975 = vunpack.c.l.b16 %v936
    %v976 = vunpack.c.l.b16 %v937
    %v977 = vunpack.c.l.b16 %v938
    %v978 = vunpack.c.l.b16 %v939
    %v979 = vunpack.c.l.b16 %v940
    %v980 = vunpack.c.l.b16 %v941
    %v981 = vunpack.c.l.b16 %v942
    %v982 = vunpack.c.l.b16 %v943
    %v983 = vunpack.c.l.b16 %v944
    %v984 = vunpack.c.l.b16 %v945
    %v985 = vunpack.c.l.b16 %v946
    %v986 = vunpack.c.l.b16 %v947
    %v987 = vunpack.c.l.b16 %v948
    %v988 = vunpack.c.l.b16 %v949
    %v989 = vunpack.c.l.b16 %v950
    %v990 = vunpack.c.l.b16 %v951
    %v991 = vpack.c.b16 %v976, %v975
    %v992 = vpack.c.b16 %v978, %v977
    %v993 = vpack.c.b16 %v980, %v979
    %v994 = vpack.c.b16 %v982, %v981
    %v995 = vpack.c.b16 %v984, %v983
    %v996 = vpack.c.b16 %v986, %v985
    %v997 = vpack.c.b16 %v988, %v987
    %v998 = vpack.c.b16 %v990, %v989
    %1007 = vmatprep.subr.bf16.mxu0 0
    %1008 = vmatpush1.bf16.msra.mxu0 %v998
    %1009 = vmatprep.subr.bf16.mxu0 0
    %1010 = vmatpush1.bf16.msra.mxu0 %v997
    %1011 = vmatprep.subr.bf16.mxu0 0
    %1012 = vmatpush1.bf16.msra.mxu0 %v996
    %1013 = vmatprep.subr.bf16.mxu0 0
    %1014 = vmatpush1.bf16.msra.mxu0 %v995
    %1015 = vmatprep.subr.bf16.mxu0 0
    %1016 = vmatpush1.bf16.msra.mxu0 %v994
    %1017 = vmatprep.subr.bf16.mxu0 0
    %1018 = vmatpush1.bf16.msra.mxu0 %v993
    %1019 = vmatprep.subr.bf16.mxu0 0
    %1020 = vmatpush1.bf16.msra.mxu0 %v992
    %1021 = vmatprep.subr.bf16.mxu0 0
    %1022 = vmatpush1.bf16.msra.mxu0 %v991
    %1023 = vmatprep.subr.bf16.mxu0 0
    %1024 = vmatpush2.bf16.msra.mxu0 0
    %1025 = vmatprep.subr.bf16.mxu0 0
    %1026 = vmatpush2.bf16.msra.mxu0 0
    %1027 = vmatprep.subr.bf16.mxu0 0
    %1028 = vmatpush2.bf16.msra.mxu0 0
    %1029 = vmatprep.subr.bf16.mxu0 0
    %1030 = vmatpush2.bf16.msra.mxu0 0
    %1031 = vmatprep.subr.bf16.mxu0 0
    %1032 = vmatpush2.bf16.msra.mxu0 0
    %1033 = vmatprep.subr.bf16.mxu0 0
    %1034 = vmatpush2.bf16.msra.mxu0 0
    %1035 = vmatprep.subr.bf16.mxu0 0
    %1036 = vmatpush2.bf16.msra.mxu0 0
    %1037 = vmatprep.subr.bf16.mxu0 0
    %1038 = vmatpush2.bf16.msra.mxu0 0
    %1039 = vmatprep.mubr.bf16.mxu0 0
    %1040 = vmatmul.mubr.bf16.gmra.mxu0 %v935
    %v1041 = vpop.f32.mrf.mxu0
    %v1042 = vadd.f32 %v957, %v1041
    %v1043 = vpop.f32.mrf.mxu0
    %v1044 = vpop.f32.mrf.mxu0
    %v1045 = vpop.f32.mrf.mxu0
    %1046 = vdwg.mxu0
    %1047 = vst [vmem:[#allocation4] sm:$0x3] %v1042
    // Predicated region
    $region30: #{network_forward.1} parent=1 // pred_check
      _
    $region31: #{network_forward.1} parent=1 // pred_check_branch
      %1049 = sbr.rel (0) target = $region33
    $region32: #{network_forward.1} parent=1 // pred_region
      %s1051 = ssub.s32 32, 32
      %1052 = vsyncadd [#allocation3], %s1051
      %s1054 = sshll.u32 [#allocation2], 4
      %s1055 = int_to_ptr.vmem [resolvable:$true] %s1054
      %1057 = dma.vmem_to_hbm [thread:$0]  %s1055, 32, %s7, [#allocation3]
    $region33: #{network_forward.1} parent=1 // pred_fallthru
      _
    // Predicated region
    $region34: #{network_forward.1} parent=1 // pred_check
      _
    $region35: #{network_forward.1} parent=1 // pred_check_branch
      %1059 = sbr.rel (0) target = $region37
    $region36: #{network_forward.1} parent=1 // pred_region
      %s1061 = ssub.s32 32, 32
      %1062 = vsyncadd [#allocation5], %s1061
      %s1064 = sshll.u32 [#allocation4], 4
      %s1065 = int_to_ptr.vmem [resolvable:$true] %s1064
      %1067 = dma.vmem_to_hbm [thread:$0]  %s1065, 32, %s8, [#allocation5]
    $region37: #{network_forward.1} parent=1 // pred_fallthru
      _
    // Predicated region
    $region38: #{network_forward.1} parent=1 // pred_check
      _
    $region39: #{network_forward.1} parent=1 // pred_check_branch
      %1069 = sbr.rel (0) target = $region41
    $region40: #{network_forward.1} parent=1 // pred_region
      %1070 = dma.done [#allocation3], 32
    $region41: #{network_forward.1} parent=1 // pred_fallthru
      _
    // Predicated region
    $region42: #{network_forward.1} parent=1 // pred_check
      _
    $region43: #{network_forward.1} parent=1 // pred_check_branch
      %1072 = sbr.rel (0) target = $region45
    $region44: #{network_forward.1} parent=1 // pred_region
      %1073 = dma.done [#allocation5], 32
    $region45: #{network_forward.1} parent=1 // pred_fallthru
      _
    %1074 = vsyncpa [#allocation3], 1
    %1075 = vsyncpa [#allocation5], 1

</llo_original>
